<compile_context>
chip_gen: v7x
topology: tpu7x:2x2x1
jax: 0.10.0
libtpu: 0.0.40
codegen_flags: <defaults>
</compile_context>

<pallas_src>
import jax
import jax.numpy as jnp
from jax.experimental import pallas as pl
from jax.experimental.pallas import tpu as pltpu

_LANE = 128


def _round_up(n, m):
    return ((n + m - 1) // m) * m


def _mlp_kernel(x_ref, w1_ref, b1_ref, w2_ref, w3_ref, o_ref):
    """One batch tile of the fused 3-layer MLP (all three matmuls on the MXU).

    x_ref : (TB, D)    f32 or bf16  activations for this batch tile
    w1_ref: (D, 128)   bf16  layer1 weight [in, out]; cols >= 64 are zero
    b1_ref: (1, 128)   f32   cols 0..63 = b1, col 64 = 1.0 (ones column)
    w2_ref: (128, 128) bf16  rows 0..63 = W2^T; row 64 = [b2 | 1.0 at col 32]
    w3_ref: (128, 128) bf16  col 0: rows 0..31 = w3, row 32 = b3; rest zero
    o_ref : (TB, 1)    f32   sigmoid output
    """
    x = x_ref[...]
    if x.dtype != jnp.bfloat16:          # static: only casts when input is f32
        x = x.astype(jnp.bfloat16)

    # layer 1 + ReLU; padded column 64 becomes exactly 1.0 (carries b2 / b3).
    h1 = jnp.dot(x, w1_ref[...], preferred_element_type=jnp.float32) + b1_ref[...]
    h1 = jnp.maximum(h1, 0.0).astype(jnp.bfloat16)

    # layer 2 + ReLU; b2 folded into row 64 of w2 (multiplied by ones column).
    h2 = jnp.dot(h1, w2_ref[...], preferred_element_type=jnp.float32)
    h2 = jnp.maximum(h2, 0.0).astype(jnp.bfloat16)

    # layer 3 on the MXU (w3 and b3 live in column 0) -- no cross-lane reduce.
    z = jnp.dot(h2, w3_ref[...], preferred_element_type=jnp.float32)
    zc = z[:, :1]

    # sigmoid(x) = 0.5 * (tanh(x/2) + 1): numerically robust, rides the EUP slot.
    o_ref[...] = (0.5 * (jnp.tanh(0.5 * zc) + 1.0)).astype(o_ref.dtype)


def prepare_params(params):
    """One-time prep (hoisted out of the forward): transpose to [in, out],
    zero-pad hidden widths to 128 lanes, fold b2/b3 into the matmuls via 'ones'
    columns carved out of the padding, and cast MXU operands to bf16."""
    w1, b1, w2, b2, w3, b3 = params          # PyTorch layout: w [out, in], b [out]
    H1, D = w1.shape
    H2 = w2.shape[0]
    one1 = H1                                 # index of the ones column in h1
    one2 = H2                                 # index of the ones column in h2
    H1p = _round_up(H1 + 1, _LANE)            # 64 -> 128
    H2p = _round_up(H2 + 1, _LANE)            # 32 -> 128

    w1p = jnp.zeros((D, H1p), jnp.float32).at[:, :H1].set(w1.T)
    b1p = (jnp.zeros((1, H1p), jnp.float32)
           .at[:, :H1].set(b1.reshape(1, -1))
           .at[:, one1].set(1.0))                       # h1[:, 64] == 1 after ReLU
    w2p = (jnp.zeros((H1p, H2p), jnp.float32)
           .at[:H1, :H2].set(w2.T)
           .at[one1, :H2].set(b2)                       # b2 via the ones column
           .at[one1, one2].set(1.0))                    # propagate ones to h2[:, 32]
    w3p = (jnp.zeros((H2p, _LANE), jnp.float32)
           .at[:H2, 0].set(w3.reshape(-1))
           .at[one2, 0].set(b3.reshape(())))            # b3 via the ones column

    return (w1p.astype(jnp.bfloat16), b1p,
            w2p.astype(jnp.bfloat16), w3p.astype(jnp.bfloat16))


def _pick_tile(B, D):
    """Batch tile: ~1-2 MiB x tile amortizes the ~0.35us/step grid overhead;
    capped at 8192 rows so the f32 hidden intermediates (~TB*128*4 B each) stay
    comfortably inside VMEM on all generations. For moderate B, force >=2
    balanced steps so the parallel batch axis can split across v7x's 2 TCs."""
    bytes_per_row = D * 4
    tb_cap = max(_LANE, min(8192, _round_up((2 << 20) // bytes_per_row, _LANE)))
    if B <= _LANE:
        return _LANE                               # single program, full lane group
    steps = max(2, -(-B // tb_cap))
    return _round_up(-(-B // steps), _LANE)


@jax.jit
def shallow_deep_nn(x, prepped):
    """Fused ShallowDeepNN forward. x: [B, D] (f32 or bf16) -> [B, 1] f32."""
    w1p, b1p, w2p, w3p = prepped
    B, D = x.shape
    tb = _pick_tile(B, D)
    b_pad = _round_up(B, tb)
    if b_pad != B:
        x = jnp.pad(x, ((0, b_pad - B), (0, 0)))

    resident = lambda a: pl.BlockSpec(a.shape, lambda i: (0, 0))  # VMEM-resident

    out = pl.pallas_call(
        _mlp_kernel,
        out_shape=jax.ShapeDtypeStruct((b_pad, 1), jnp.float32),
        grid=(b_pad // tb,),
        in_specs=[
            pl.BlockSpec((tb, D), lambda i: (i, 0)),   # x: batch-tiled, streamed
            resident(w1p), resident(b1p),
            resident(w2p), resident(w3p),
        ],
        out_specs=pl.BlockSpec((tb, 1), lambda i: (i, 0)),
        compiler_params=pltpu.CompilerParams(
            dimension_semantics=("parallel",),          # shard batch across TCs
            vmem_limit_bytes=48 * 1024 * 1024),
    )(x, w1p, b1p, w2p, w3p)

    return out[:B]


def init_params(input_dim, key):
    """PyTorch nn.Linear-style params: w [out, in], b [out], U(+-1/sqrt(fan_in))."""
    def linear(key, fan_in, fan_out):
        kw, kb = jax.random.split(key)
        bound = fan_in ** -0.5
        w = jax.random.uniform(kw, (fan_out, fan_in), jnp.float32, -bound, bound)
        b = jax.random.uniform(kb, (fan_out,), jnp.float32, -bound, bound)
        return w, b

    k1, k2, k3 = jax.random.split(key, 3)
    w1, b1 = linear(k1, input_dim, 64)
    w2, b2 = linear(k2, 64, 32)
    w3, b3 = linear(k3, 32, 1)
    return (w1, b1, w2, b2, w3, b3)


def reference(x, params):
    """Pure-JAX (f32) reference mirroring the PyTorch module."""
    w1, b1, w2, b2, w3, b3 = params
    h = jnp.maximum(x @ w1.T + b1, 0.0)
    h = jnp.maximum(h @ w2.T + b2, 0.0)
    return jax.nn.sigmoid(h @ w3.T + b3)


if __name__ == "__main__":
    key = jax.random.PRNGKey(0)
    k_x, k_p, k_big = jax.random.split(key, 3)

    batch, input_dim = 8, 32
    params = init_params(input_dim, k_p)
    prepped = prepare_params(params)          # one-time prep, hoisted out of forward

    # Small case (single program, 128-row padded tile).
    x = jax.random.normal(k_x, (batch, input_dim), jnp.float32)
    out = jax.block_until_ready(shallow_deep_nn(x, prepped))
    ref = reference(x, params)
    assert out.shape == (batch, 1)
    # bf16 MXU operands -> compare against the f32 reference with a loose tol.
    assert jnp.allclose(out, ref, atol=2e-2, rtol=0), float(jnp.max(jnp.abs(out - ref)))

    # Multi-step batch grid (2 steps of 512 rows: exercises pipelining + TC split).
    xb = jax.random.normal(k_big, (1024, input_dim), jnp.float32)
    outb = jax.block_until_ready(shallow_deep_nn(xb, prepped))
    refb = reference(xb, params)
    assert outb.shape == (1024, 1)
    assert jnp.allclose(outb, refb, atol=2e-2, rtol=0), float(jnp.max(jnp.abs(outb - refb)))

    print("KERNEL_OK")
</pallas_src>

<mosaic_0001>
module attributes {stable_mosaic.version = 11 : i64} {
  func.func @_mlp_kernel(%arg0: i32, %arg1: memref<128x32xf32, #tpu.memory_space<vmem>>, %arg2: memref<32x128xbf16, #tpu.memory_space<vmem>>, %arg3: memref<1x128xf32, #tpu.memory_space<vmem>>, %arg4: memref<128x128xbf16, #tpu.memory_space<vmem>>, %arg5: memref<128x128xbf16, #tpu.memory_space<vmem>>, %arg6: memref<128x1xf32, #tpu.memory_space<vmem>>) attributes {dimension_semantics = [#tpu.dimension_semantics<parallel>], iteration_bounds = array<i64: 1>, scalar_prefetch = 0 : i64, scratch_operands = 0 : i64, tpu.core_type = #tpu.core_type<tc>, window_params = [{transform_indices = @transform_0, window_bounds = array<i64: 128, 32>}, {pipeline_mode = #tpu.pipeline_mode<synchronous>, transform_indices = @transform_1, window_bounds = array<i64: 32, 128>}, {pipeline_mode = #tpu.pipeline_mode<synchronous>, transform_indices = @transform_2, window_bounds = array<i64: 1, 128>}, {pipeline_mode = #tpu.pipeline_mode<synchronous>, transform_indices = @transform_3, window_bounds = array<i64: 128, 128>}, {pipeline_mode = #tpu.pipeline_mode<synchronous>, transform_indices = @transform_4, window_bounds = array<i64: 128, 128>}, {transform_indices = @transform_5, window_bounds = array<i64: 128, 1>}]} {
    %c0 = arith.constant 0 : index
    %c0_0 = arith.constant 0 : index
    %0 = vector.load %arg1[%c0, %c0_0] : memref<128x32xf32, #tpu.memory_space<vmem>>, vector<128x32xf32>
    %1 = arith.truncf %0 : vector<128x32xf32> to vector<128x32xbf16>
    %c0_1 = arith.constant 0 : index
    %c0_2 = arith.constant 0 : index
    %2 = vector.load %arg2[%c0_1, %c0_2] : memref<32x128xbf16, #tpu.memory_space<vmem>>, vector<32x128xbf16>
    %cst = arith.constant dense<0.000000e+00> : vector<128x128xf32>
    %3 = tpu.matmul %1, %2, %cst {dimension_numbers = #tpu.dot_dimension_numbers<[1], [0], [0], [1], [0, 0, 1, 1], [], []>} : vector<128x32xbf16>, vector<32x128xbf16>, vector<128x128xf32> -> vector<128x128xf32>
    %c0_3 = arith.constant 0 : index
    %c0_4 = arith.constant 0 : index
    %4 = vector.load %arg3[%c0_3, %c0_4] : memref<1x128xf32, #tpu.memory_space<vmem>>, vector<1x128xf32>
    %5 = vector.broadcast %4 : vector<1x128xf32> to vector<128x128xf32>
    %6 = arith.addf %3, %5 : vector<128x128xf32>
    %cst_5 = arith.constant 0.000000e+00 : f32
    %7 = vector.broadcast %cst_5 : f32 to vector<128x128xf32>
    %8 = arith.maximumf %6, %7 : vector<128x128xf32>
    %9 = arith.truncf %8 : vector<128x128xf32> to vector<128x128xbf16>
    %c0_6 = arith.constant 0 : index
    %c0_7 = arith.constant 0 : index
    %10 = vector.load %arg4[%c0_6, %c0_7] : memref<128x128xbf16, #tpu.memory_space<vmem>>, vector<128x128xbf16>
    %cst_8 = arith.constant dense<0.000000e+00> : vector<128x128xf32>
    %11 = tpu.matmul %9, %10, %cst_8 {dimension_numbers = #tpu.dot_dimension_numbers<[1], [0], [0], [1], [0, 0, 1, 1], [], []>} : vector<128x128xbf16>, vector<128x128xbf16>, vector<128x128xf32> -> vector<128x128xf32>
    %cst_9 = arith.constant 0.000000e+00 : f32
    %12 = vector.broadcast %cst_9 : f32 to vector<128x128xf32>
    %13 = arith.maximumf %11, %12 : vector<128x128xf32>
    %14 = arith.truncf %13 : vector<128x128xf32> to vector<128x128xbf16>
    %c0_10 = arith.constant 0 : index
    %c0_11 = arith.constant 0 : index
    %15 = vector.load %arg5[%c0_10, %c0_11] : memref<128x128xbf16, #tpu.memory_space<vmem>>, vector<128x128xbf16>
    %cst_12 = arith.constant dense<0.000000e+00> : vector<128x128xf32>
    %16 = tpu.matmul %14, %15, %cst_12 {dimension_numbers = #tpu.dot_dimension_numbers<[1], [0], [0], [1], [0, 0, 1, 1], [], []>} : vector<128x128xbf16>, vector<128x128xbf16>, vector<128x128xf32> -> vector<128x128xf32>
    %17 = vector.extract_strided_slice %16 {offsets = [0, 0], sizes = [128, 1], strides = [1, 1]} : vector<128x128xf32> to vector<128x1xf32>
    %cst_13 = arith.constant 5.000000e-01 : f32
    %18 = vector.broadcast %cst_13 : f32 to vector<128x1xf32>
    %19 = arith.mulf %18, %17 : vector<128x1xf32>
    %20 = math.tanh %19 : vector<128x1xf32>
    %cst_14 = arith.constant 1.000000e+00 : f32
    %21 = vector.broadcast %cst_14 : f32 to vector<128x1xf32>
    %22 = arith.addf %20, %21 : vector<128x1xf32>
    %cst_15 = arith.constant 5.000000e-01 : f32
    %23 = vector.broadcast %cst_15 : f32 to vector<128x1xf32>
    %24 = arith.mulf %23, %22 : vector<128x1xf32>
    %c0_16 = arith.constant 0 : index
    %c0_17 = arith.constant 0 : index
    %25 = vector.load %arg6[%c0_16, %c0_17] : memref<128x1xf32, #tpu.memory_space<vmem>>, vector<128x1xf32>
    tpu.vector_store %arg6[%c0_16, %c0_17], %24 {strides = array<i32>} : memref<128x1xf32, #tpu.memory_space<vmem>>, vector<128x1xf32>,
    return
  }
  func.func @transform_0(%arg0: i32) -> (i32, i32) {
    %c0_i32 = arith.constant 0 : i32
    %c0_i32_0 = arith.constant 0 : i32
    return %arg0, %c0_i32 : i32, i32
  }
  func.func @transform_1(%arg0: i32) -> (i32, i32) {
    %c0_i32 = arith.constant 0 : i32
    %c0_i32_0 = arith.constant 0 : i32
    %c0_i32_1 = arith.constant 0 : i32
    return %c0_i32, %c0_i32_0 : i32, i32
  }
  func.func @transform_2(%arg0: i32) -> (i32, i32) {
    %c0_i32 = arith.constant 0 : i32
    %c0_i32_0 = arith.constant 0 : i32
    %c0_i32_1 = arith.constant 0 : i32
    return %c0_i32, %c0_i32_0 : i32, i32
  }
  func.func @transform_3(%arg0: i32) -> (i32, i32) {
    %c0_i32 = arith.constant 0 : i32
    %c0_i32_0 = arith.constant 0 : i32
    %c0_i32_1 = arith.constant 0 : i32
    return %c0_i32, %c0_i32_0 : i32, i32
  }
  func.func @transform_4(%arg0: i32) -> (i32, i32) {
    %c0_i32 = arith.constant 0 : i32
    %c0_i32_0 = arith.constant 0 : i32
    %c0_i32_1 = arith.constant 0 : i32
    return %c0_i32, %c0_i32_0 : i32, i32
  }
  func.func @transform_5(%arg0: i32) -> (i32, i32) {
    %c0_i32 = arith.constant 0 : i32
    %c0_i32_0 = arith.constant 0 : i32
    return %arg0, %c0_i32 : i32, i32
  }
}

</mosaic_0001>

<llo_original>
// kernel: shallow_deep_nn.1
$region0: #{shallow_deep_nn.1}
  #allocation0 [shape = 'u32[]', space=smem, size = 0x4, offset = 0x4, fixed_abs, tag = 'smem constant byte address 0x4 - core index']
  #allocation1 [shape = 'u32[144,128]{1,0:T(1,128)}', space=vmem, size = 0x12000, scoped, tag = 'internal scratch']
  %s0 = inlined_call_operand.vmem [shape: f32[128,32], index: 0, kind: input, shape index: {}]
  %s1 = inlined_call_operand.hbm [shape: bf16[32,128], index: 1, kind: input, shape index: {}]
  %s2 = inlined_call_operand.vmem [shape: f32[1,128], index: 2, kind: input, shape index: {}]
  %s3 = inlined_call_operand.vmem [shape: bf16[128,128], index: 3, kind: input, shape index: {}]
  %s4 = inlined_call_operand.vmem [shape: bf16[128,128], index: 4, kind: input, shape index: {}]
  %s5 = inlined_call_operand.vmem [shape: f32[128,1], index: 5, kind: output, shape index: {}]
  %s6 = sld [smem:[#allocation0]]
  $region34: #{shallow_deep_nn.1} parent=0
    _
  %s8 = ssub.s32 1, %s6
  %s9 = scalar_select 0, %s8, %s6
  $region1: #{shallow_deep_nn.1} parent=0
    #allocation2 [shape = 'u8[8192]{0}', space=vmem, size = 0x2000, scoped, tag = 'input window, operand 1, single buffered']
    #allocation3 [shape = 's32[1]{0}', space=sflag, size = 0x4, scoped, tag = 'scoped memory for shallow_deep_nn.1']
    %10 = vsyncpa [#allocation3], 0
    // Predicated region
    $region2: #{shallow_deep_nn.1} parent=1 // pred_check
      _
    $region3: #{shallow_deep_nn.1} parent=1 // pred_check_branch
      %12 = sbr.rel (0) target = $region5
    $region4: #{shallow_deep_nn.1} parent=1 // pred_region
      _
    $region5: #{shallow_deep_nn.1} parent=1 // pred_fallthru
      _
    // Predicated region
    $region6: #{shallow_deep_nn.1} parent=1 // pred_check
      _
    $region7: #{shallow_deep_nn.1} parent=1 // pred_check_branch
      %14 = sbr.rel (0) target = $region9
    $region8: #{shallow_deep_nn.1} parent=1 // pred_region
      %s16 = ssub.s32 256, 256
      %17 = vsyncadd [#allocation3], %s16
      %s18 = sshll.u32 [#allocation2], 4
      %s19 = int_to_ptr.vmem [resolvable:$true] %s18
      %24 = dma.hbm_to_vmem [thread:$0]  %s1, 256, %s19, [#allocation3], 64, 64, 4
    $region9: #{shallow_deep_nn.1} parent=1 // pred_fallthru
      _
    // Predicated region
    $region10: #{shallow_deep_nn.1} parent=1 // pred_check
      _
    $region11: #{shallow_deep_nn.1} parent=1 // pred_check_branch
      %26 = sbr.rel (0) target = $region13
    $region12: #{shallow_deep_nn.1} parent=1 // pred_region
      _
    $region13: #{shallow_deep_nn.1} parent=1 // pred_fallthru
      _
    // Predicated region
    $region14: #{shallow_deep_nn.1} parent=1 // pred_check
      _
    $region15: #{shallow_deep_nn.1} parent=1 // pred_check_branch
      %28 = sbr.rel (0) target = $region17
    $region16: #{shallow_deep_nn.1} parent=1 // pred_region
      _
    $region17: #{shallow_deep_nn.1} parent=1 // pred_fallthru
      _
    // Predicated region
    $region18: #{shallow_deep_nn.1} parent=1 // pred_check
      _
    $region19: #{shallow_deep_nn.1} parent=1 // pred_check_branch
      %30 = sbr.rel (0) target = $region21
    $region20: #{shallow_deep_nn.1} parent=1 // pred_region
      _
    $region21: #{shallow_deep_nn.1} parent=1 // pred_fallthru
      _
    // Predicated region
    $region22: #{shallow_deep_nn.1} parent=1 // pred_check
      _
    $region23: #{shallow_deep_nn.1} parent=1 // pred_check_branch
      %32 = sbr.rel (0) target = $region25
    $region24: #{shallow_deep_nn.1} parent=1 // pred_region
      %33 = dma.done [#allocation3], 256
    $region25: #{shallow_deep_nn.1} parent=1 // pred_fallthru
      _
    %v35 = vld [vmem:[%s0] sm:$0xff]
    %v36 = vld [vmem:[%s0 + $0x8] sm:$0xff]
    %v37 = vld [vmem:[%s0 + $0x10] sm:$0xff]
    %v38 = vld [vmem:[%s0 + $0x18] sm:$0xff]
    %v39 = vld [vmem:[%s0 + $0x20] sm:$0xff]
    %v40 = vld [vmem:[%s0 + $0x28] sm:$0xff]
    %v41 = vld [vmem:[%s0 + $0x30] sm:$0xff]
    %v42 = vld [vmem:[%s0 + $0x38] sm:$0xff]
    %v43 = vld [vmem:[%s0 + $0x40] sm:$0xff]
    %v44 = vld [vmem:[%s0 + $0x48] sm:$0xff]
    %v45 = vld [vmem:[%s0 + $0x50] sm:$0xff]
    %v46 = vld [vmem:[%s0 + $0x58] sm:$0xff]
    %v47 = vld [vmem:[%s0 + $0x60] sm:$0xff]
    %v48 = vld [vmem:[%s0 + $0x68] sm:$0xff]
    %v49 = vld [vmem:[%s0 + $0x70] sm:$0xff]
    %v50 = vld [vmem:[%s0 + $0x78] sm:$0xff]
    %v51 = vpack.c.bf16 %v36, %v35
    %v52 = vpack.c.bf16 %v38, %v37
    %v53 = vpack.c.bf16 %v40, %v39
    %v54 = vpack.c.bf16 %v42, %v41
    %v55 = vpack.c.bf16 %v44, %v43
    %v56 = vpack.c.bf16 %v46, %v45
    %v57 = vpack.c.bf16 %v48, %v47
    %v58 = vpack.c.bf16 %v50, %v49
    %v59 = vld [vmem:[#allocation2] sm:$0xf]
    %v60 = vld [vmem:[#allocation2 + $0x4] sm:$0xf]
    %v61 = vld [vmem:[#allocation2 + $0x8] sm:$0xf]
    %v62 = vld [vmem:[#allocation2 + $0xc] sm:$0xf]
    %v63 = vld [vmem:[%s2] sm:$0x1]
    %v65 = vlaneseq
    %v66 = vshrl.u32 %v65, 7
    %v67 = vsub.s32 0, %v66
    %v68 = vrot.slane %v63, %v67
    %v74 = vunpack.c.l.b16 %v59
    %v75 = vunpack.c.l.b16 %v60
    %v76 = vunpack.c.l.b16 %v61
    %v77 = vunpack.c.l.b16 %v62
    %v78 = vpack.c.b16 %v75, %v74
    %v79 = vpack.c.b16 %v77, %v76
    %vm82 = vcmask 261120
    %v84 = vsel %vm82, %v51, 0
    %v87 = vsel %vm82, %v52, 0
    %v90 = vsel %vm82, %v53, 0
    %v93 = vsel %vm82, %v54, 0
    %v96 = vsel %vm82, %v55, 0
    %v99 = vsel %vm82, %v56, 0
    %v102 = vsel %vm82, %v57, 0
    %v105 = vsel %vm82, %v58, 0
    %107 = vmatprep.subr.bf16.mxu0 0
    %108 = vmatpush1.bf16.msra.mxu0 %v78
    %109 = vmatprep.subr.bf16.mxu0 0
    %110 = vmatpush1.bf16.msra.mxu0 %v79
    %111 = vmatprep.subr.bf16.mxu0 0
    %112 = vmatpush1.bf16.msra.mxu0 0
    %113 = vmatprep.subr.bf16.mxu0 0
    %114 = vmatpush1.bf16.msra.mxu0 0
    %115 = vmatprep.subr.bf16.mxu0 0
    %116 = vmatpush1.bf16.msra.mxu0 0
    %117 = vmatprep.subr.bf16.mxu0 0
    %118 = vmatpush1.bf16.msra.mxu0 0
    %119 = vmatprep.subr.bf16.mxu0 0
    %120 = vmatpush1.bf16.msra.mxu0 0
    %121 = vmatprep.subr.bf16.mxu0 0
    %122 = vmatpush1.bf16.msra.mxu0 0
    %123 = vmatprep.subr.bf16.mxu0 0
    %124 = vmatpush1.bf16.msra.mxu0 0
    %125 = vmatprep.subr.bf16.mxu0 0
    %126 = vmatpush1.bf16.msra.mxu0 0
    %127 = vmatprep.subr.bf16.mxu0 0
    %128 = vmatpush1.bf16.msra.mxu0 0
    %129 = vmatprep.subr.bf16.mxu0 0
    %130 = vmatpush1.bf16.msra.mxu0 0
    %131 = vmatprep.subr.bf16.mxu0 0
    %132 = vmatpush1.bf16.msra.mxu0 0
    %133 = vmatprep.subr.bf16.mxu0 0
    %134 = vmatpush1.bf16.msra.mxu0 0
    %135 = vmatprep.subr.bf16.mxu0 0
    %136 = vmatpush1.bf16.msra.mxu0 0
    %137 = vmatprep.subr.bf16.mxu0 0
    %138 = vmatpush1.bf16.msra.mxu0 0
    %139 = vmatprep.mubr.bf16.mxu0 0
    %140 = vmatmul.mubr.bf16.gmra.mrb[0].mxu0 %v84
    %v141 = vpop.f32.mrb[0].mxu0
    %v142 = vadd.f32 %v68, %v141
    %v143 = vpop.f32.mrb[0].mxu0
    %v144 = vpop.f32.mrb[0].mxu0
    %v145 = vadd.f32 %v68, %v144
    %v146 = vpop.f32.mrb[0].mxu0
    %147 = vmatprep.mubr.bf16.mxu0 0
    %148 = vmatmul.mubr.bf16.gmra.mrb[0].mxu0 %v87
    %v149 = vpop.f32.mrb[0].mxu0
    %v150 = vadd.f32 %v68, %v149
    %v151 = vpop.f32.mrb[0].mxu0
    %v152 = vpop.f32.mrb[0].mxu0
    %v153 = vadd.f32 %v68, %v152
    %v154 = vpop.f32.mrb[0].mxu0
    %155 = vmatprep.mubr.bf16.mxu0 0
    %156 = vmatmul.mubr.bf16.gmra.mrb[0].mxu0 %v90
    %v157 = vpop.f32.mrb[0].mxu0
    %v158 = vadd.f32 %v68, %v157
    %v159 = vpop.f32.mrb[0].mxu0
    %v160 = vpop.f32.mrb[0].mxu0
    %v161 = vadd.f32 %v68, %v160
    %v162 = vpop.f32.mrb[0].mxu0
    %163 = vmatprep.mubr.bf16.mxu0 0
    %164 = vmatmul.mubr.bf16.gmra.mrb[0].mxu0 %v93
    %v165 = vpop.f32.mrb[0].mxu0
    %v166 = vadd.f32 %v68, %v165
    %v167 = vpop.f32.mrb[0].mxu0
    %v168 = vpop.f32.mrb[0].mxu0
    %v169 = vadd.f32 %v68, %v168
    %v170 = vpop.f32.mrb[0].mxu0
    %171 = vmatprep.mubr.bf16.mxu0 0
    %172 = vmatmul.mubr.bf16.gmra.mrb[0].mxu0 %v96
    %v173 = vpop.f32.mrb[0].mxu0
    %v174 = vadd.f32 %v68, %v173
    %v175 = vpop.f32.mrb[0].mxu0
    %v176 = vpop.f32.mrb[0].mxu0
    %v177 = vadd.f32 %v68, %v176
    %v178 = vpop.f32.mrb[0].mxu0
    %179 = vmatprep.mubr.bf16.mxu0 0
    %180 = vmatmul.mubr.bf16.gmra.mrb[0].mxu0 %v99
    %v181 = vpop.f32.mrb[0].mxu0
    %v182 = vadd.f32 %v68, %v181
    %v183 = vpop.f32.mrb[0].mxu0
    %v184 = vpop.f32.mrb[0].mxu0
    %v185 = vadd.f32 %v68, %v184
    %v186 = vpop.f32.mrb[0].mxu0
    %187 = vmatprep.mubr.bf16.mxu0 0
    %188 = vmatmul.mubr.bf16.gmra.mrb[0].mxu0 %v102
    %v189 = vpop.f32.mrb[0].mxu0
    %v190 = vadd.f32 %v68, %v189
    %v191 = vpop.f32.mrb[0].mxu0
    %v192 = vpop.f32.mrb[0].mxu0
    %v193 = vadd.f32 %v68, %v192
    %v194 = vpop.f32.mrb[0].mxu0
    %195 = vmatprep.mubr.bf16.mxu0 0
    %196 = vmatmul.mubr.bf16.gmra.mrb[0].mxu0 %v105
    %v197 = vpop.f32.mrb[0].mxu0
    %v198 = vadd.f32 %v68, %v197
    %v199 = vpop.f32.mrb[0].mxu0
    %v200 = vpop.f32.mrb[0].mxu0
    %v201 = vadd.f32 %v68, %v200
    %v202 = vpop.f32.mrb[0].mxu0
    %203 = vdwg.mxu0
    %v204 = vmax.f32 %v142, 0.0
    %v205 = vmax.f32 %v145, 0.0
    %v206 = vmax.f32 %v150, 0.0
    %v207 = vmax.f32 %v153, 0.0
    %v208 = vmax.f32 %v158, 0.0
    %v209 = vmax.f32 %v161, 0.0
    %v210 = vmax.f32 %v166, 0.0
    %v211 = vmax.f32 %v169, 0.0
    %v212 = vmax.f32 %v174, 0.0
    %v213 = vmax.f32 %v177, 0.0
    %v214 = vmax.f32 %v182, 0.0
    %v215 = vmax.f32 %v185, 0.0
    %v216 = vmax.f32 %v190, 0.0
    %v217 = vmax.f32 %v193, 0.0
    %v218 = vmax.f32 %v198, 0.0
    %v219 = vmax.f32 %v201, 0.0
    %v220 = vpack.c.bf16 %v205, %v204
    %v221 = vpack.c.bf16 %v207, %v206
    %v222 = vpack.c.bf16 %v209, %v208
    %v223 = vpack.c.bf16 %v211, %v210
    %v224 = vpack.c.bf16 %v213, %v212
    %v225 = vpack.c.bf16 %v215, %v214
    %v226 = vpack.c.bf16 %v217, %v216
    %v227 = vpack.c.bf16 %v219, %v218
    %v228 = vld [vmem:[%s3] sm:$0xf]
    %v229 = vld [vmem:[%s3 + $0x4] sm:$0xf]
    %v230 = vld [vmem:[%s3 + $0x8] sm:$0xf]
    %v231 = vld [vmem:[%s3 + $0xc] sm:$0xf]
    %v232 = vld [vmem:[%s3 + $0x10] sm:$0xf]
    %v233 = vld [vmem:[%s3 + $0x14] sm:$0xf]
    %v234 = vld [vmem:[%s3 + $0x18] sm:$0xf]
    %v235 = vld [vmem:[%s3 + $0x1c] sm:$0xf]
    %v236 = vld [vmem:[%s3 + $0x20] sm:$0xf]
    %v237 = vld [vmem:[%s3 + $0x24] sm:$0xf]
    %v238 = vld [vmem:[%s3 + $0x28] sm:$0xf]
    %v239 = vld [vmem:[%s3 + $0x2c] sm:$0xf]
    %v240 = vld [vmem:[%s3 + $0x30] sm:$0xf]
    %v241 = vld [vmem:[%s3 + $0x34] sm:$0xf]
    %v242 = vld [vmem:[%s3 + $0x38] sm:$0xf]
    %v243 = vld [vmem:[%s3 + $0x3c] sm:$0xf]
    %v260 = vunpack.c.l.b16 %v228
    %v261 = vunpack.c.l.b16 %v229
    %v262 = vunpack.c.l.b16 %v230
    %v263 = vunpack.c.l.b16 %v231
    %v264 = vunpack.c.l.b16 %v232
    %v265 = vunpack.c.l.b16 %v233
    %v266 = vunpack.c.l.b16 %v234
    %v267 = vunpack.c.l.b16 %v235
    %v268 = vunpack.c.l.b16 %v236
    %v269 = vunpack.c.l.b16 %v237
    %v270 = vunpack.c.l.b16 %v238
    %v271 = vunpack.c.l.b16 %v239
    %v272 = vunpack.c.l.b16 %v240
    %v273 = vunpack.c.l.b16 %v241
    %v274 = vunpack.c.l.b16 %v242
    %v275 = vunpack.c.l.b16 %v243
    %v276 = vpack.c.b16 %v261, %v260
    %v277 = vpack.c.b16 %v263, %v262
    %v278 = vpack.c.b16 %v265, %v264
    %v279 = vpack.c.b16 %v267, %v266
    %v280 = vpack.c.b16 %v269, %v268
    %v281 = vpack.c.b16 %v271, %v270
    %v282 = vpack.c.b16 %v273, %v272
    %v283 = vpack.c.b16 %v275, %v274
    %292 = vmatprep.subr.bf16.mxu0 0
    %293 = vmatpush1.bf16.msra.mxu0 %v276
    %294 = vmatprep.subr.bf16.mxu0 0
    %295 = vmatpush1.bf16.msra.mxu0 %v277
    %296 = vmatprep.subr.bf16.mxu0 0
    %297 = vmatpush1.bf16.msra.mxu0 %v278
    %298 = vmatprep.subr.bf16.mxu0 0
    %299 = vmatpush1.bf16.msra.mxu0 %v279
    %300 = vmatprep.subr.bf16.mxu0 0
    %301 = vmatpush1.bf16.msra.mxu0 %v280
    %302 = vmatprep.subr.bf16.mxu0 0
    %303 = vmatpush1.bf16.msra.mxu0 %v281
    %304 = vmatprep.subr.bf16.mxu0 0
    %305 = vmatpush1.bf16.msra.mxu0 %v282
    %306 = vmatprep.subr.bf16.mxu0 0
    %307 = vmatpush1.bf16.msra.mxu0 %v283
    %308 = vmatprep.subr.bf16.mxu0 0
    %309 = vmatpush1.bf16.msra.mxu0 0
    %310 = vmatprep.subr.bf16.mxu0 0
    %311 = vmatpush1.bf16.msra.mxu0 0
    %312 = vmatprep.subr.bf16.mxu0 0
    %313 = vmatpush1.bf16.msra.mxu0 0
    %314 = vmatprep.subr.bf16.mxu0 0
    %315 = vmatpush1.bf16.msra.mxu0 0
    %316 = vmatprep.subr.bf16.mxu0 0
    %317 = vmatpush1.bf16.msra.mxu0 0
    %318 = vmatprep.subr.bf16.mxu0 0
    %319 = vmatpush1.bf16.msra.mxu0 0
    %320 = vmatprep.subr.bf16.mxu0 0
    %321 = vmatpush1.bf16.msra.mxu0 0
    %322 = vmatprep.subr.bf16.mxu0 0
    %323 = vmatpush1.bf16.msra.mxu0 0
    %324 = vmatprep.mubr.bf16.mxu0 0
    %325 = vmatmul.mubr.bf16.gmra.mrb[0].mxu0 %v220
    %v326 = vpop.f32.mrb[0].mxu0
    %v327 = vadd.f32 0.0, %v326
    %v328 = vpop.f32.mrb[0].mxu0
    %v329 = vpop.f32.mrb[0].mxu0
    %v330 = vadd.f32 0.0, %v329
    %v331 = vpop.f32.mrb[0].mxu0
    %332 = vmatprep.mubr.bf16.mxu0 0
    %333 = vmatmul.mubr.bf16.gmra.mrb[0].mxu0 %v221
    %v334 = vpop.f32.mrb[0].mxu0
    %v335 = vadd.f32 0.0, %v334
    %v336 = vpop.f32.mrb[0].mxu0
    %v337 = vpop.f32.mrb[0].mxu0
    %v338 = vadd.f32 0.0, %v337
    %v339 = vpop.f32.mrb[0].mxu0
    %340 = vmatprep.mubr.bf16.mxu0 0
    %341 = vmatmul.mubr.bf16.gmra.mrb[0].mxu0 %v222
    %v342 = vpop.f32.mrb[0].mxu0
    %v343 = vadd.f32 0.0, %v342
    %v344 = vpop.f32.mrb[0].mxu0
    %v345 = vpop.f32.mrb[0].mxu0
    %v346 = vadd.f32 0.0, %v345
    %v347 = vpop.f32.mrb[0].mxu0
    %348 = vmatprep.mubr.bf16.mxu0 0
    %349 = vmatmul.mubr.bf16.gmra.mrb[0].mxu0 %v223
    %v350 = vpop.f32.mrb[0].mxu0
    %v351 = vadd.f32 0.0, %v350
    %v352 = vpop.f32.mrb[0].mxu0
    %v353 = vpop.f32.mrb[0].mxu0
    %v354 = vadd.f32 0.0, %v353
    %v355 = vpop.f32.mrb[0].mxu0
    %356 = vmatprep.mubr.bf16.mxu0 0
    %357 = vmatmul.mubr.bf16.gmra.mrb[0].mxu0 %v224
    %v358 = vpop.f32.mrb[0].mxu0
    %v359 = vadd.f32 0.0, %v358
    %v360 = vpop.f32.mrb[0].mxu0
    %v361 = vpop.f32.mrb[0].mxu0
    %v362 = vadd.f32 0.0, %v361
    %v363 = vpop.f32.mrb[0].mxu0
    %364 = vmatprep.mubr.bf16.mxu0 0
    %365 = vmatmul.mubr.bf16.gmra.mrb[0].mxu0 %v225
    %v366 = vpop.f32.mrb[0].mxu0
    %v367 = vadd.f32 0.0, %v366
    %v368 = vpop.f32.mrb[0].mxu0
    %v369 = vpop.f32.mrb[0].mxu0
    %v370 = vadd.f32 0.0, %v369
    %v371 = vpop.f32.mrb[0].mxu0
    %372 = vmatprep.mubr.bf16.mxu0 0
    %373 = vmatmul.mubr.bf16.gmra.mrb[0].mxu0 %v226
    %v374 = vpop.f32.mrb[0].mxu0
    %v375 = vadd.f32 0.0, %v374
    %v376 = vpop.f32.mrb[0].mxu0
    %v377 = vpop.f32.mrb[0].mxu0
    %v378 = vadd.f32 0.0, %v377
    %v379 = vpop.f32.mrb[0].mxu0
    %380 = vmatprep.mubr.bf16.mxu0 0
    %381 = vmatmul.mubr.bf16.gmra.mrb[0].mxu0 %v227
    %v382 = vpop.f32.mrb[0].mxu0
    %v383 = vadd.f32 0.0, %v382
    %v384 = vpop.f32.mrb[0].mxu0
    %v385 = vpop.f32.mrb[0].mxu0
    %v386 = vadd.f32 0.0, %v385
    %v387 = vpop.f32.mrb[0].mxu0
    %388 = vdwg.mxu0
    %v389 = vmax.f32 %v327, 0.0
    %v390 = vmax.f32 %v330, 0.0
    %v391 = vmax.f32 %v335, 0.0
    %v392 = vmax.f32 %v338, 0.0
    %v393 = vmax.f32 %v343, 0.0
    %v394 = vmax.f32 %v346, 0.0
    %v395 = vmax.f32 %v351, 0.0
    %v396 = vmax.f32 %v354, 0.0
    %v397 = vmax.f32 %v359, 0.0
    %v398 = vmax.f32 %v362, 0.0
    %v399 = vmax.f32 %v367, 0.0
    %v400 = vmax.f32 %v370, 0.0
    %v401 = vmax.f32 %v375, 0.0
    %v402 = vmax.f32 %v378, 0.0
    %v403 = vmax.f32 %v383, 0.0
    %v404 = vmax.f32 %v386, 0.0
    %v405 = vpack.c.bf16 %v390, %v389
    %v406 = vpack.c.bf16 %v392, %v391
    %v407 = vpack.c.bf16 %v394, %v393
    %v408 = vpack.c.bf16 %v396, %v395
    %v409 = vpack.c.bf16 %v398, %v397
    %v410 = vpack.c.bf16 %v400, %v399
    %v411 = vpack.c.bf16 %v402, %v401
    %v412 = vpack.c.bf16 %v404, %v403
    %v413 = vld [vmem:[%s4] sm:$0xf]
    %v414 = vld [vmem:[%s4 + $0x4] sm:$0xf]
    %v415 = vld [vmem:[%s4 + $0x8] sm:$0xf]
    %v416 = vld [vmem:[%s4 + $0xc] sm:$0xf]
    %v417 = vld [vmem:[%s4 + $0x10] sm:$0xf]
    %v418 = vld [vmem:[%s4 + $0x14] sm:$0xf]
    %v419 = vld [vmem:[%s4 + $0x18] sm:$0xf]
    %v420 = vld [vmem:[%s4 + $0x1c] sm:$0xf]
    %v421 = vld [vmem:[%s4 + $0x20] sm:$0xf]
    %v422 = vld [vmem:[%s4 + $0x24] sm:$0xf]
    %v423 = vld [vmem:[%s4 + $0x28] sm:$0xf]
    %v424 = vld [vmem:[%s4 + $0x2c] sm:$0xf]
    %v425 = vld [vmem:[%s4 + $0x30] sm:$0xf]
    %v426 = vld [vmem:[%s4 + $0x34] sm:$0xf]
    %v427 = vld [vmem:[%s4 + $0x38] sm:$0xf]
    %v428 = vld [vmem:[%s4 + $0x3c] sm:$0xf]
    %v445 = vunpack.c.l.b16 %v413
    %v446 = vunpack.c.l.b16 %v414
    %v447 = vunpack.c.l.b16 %v415
    %v448 = vunpack.c.l.b16 %v416
    %v449 = vunpack.c.l.b16 %v417
    %v450 = vunpack.c.l.b16 %v418
    %v451 = vunpack.c.l.b16 %v419
    %v452 = vunpack.c.l.b16 %v420
    %v453 = vunpack.c.l.b16 %v421
    %v454 = vunpack.c.l.b16 %v422
    %v455 = vunpack.c.l.b16 %v423
    %v456 = vunpack.c.l.b16 %v424
    %v457 = vunpack.c.l.b16 %v425
    %v458 = vunpack.c.l.b16 %v426
    %v459 = vunpack.c.l.b16 %v427
    %v460 = vunpack.c.l.b16 %v428
    %v461 = vpack.c.b16 %v446, %v445
    %v462 = vpack.c.b16 %v448, %v447
    %v463 = vpack.c.b16 %v450, %v449
    %v464 = vpack.c.b16 %v452, %v451
    %v465 = vpack.c.b16 %v454, %v453
    %v466 = vpack.c.b16 %v456, %v455
    %v467 = vpack.c.b16 %v458, %v457
    %v468 = vpack.c.b16 %v460, %v459
    %477 = vmatprep.subr.bf16.mxu0 0
    %478 = vmatpush1.bf16.msra.mxu0 %v461
    %479 = vmatprep.subr.bf16.mxu0 0
    %480 = vmatpush1.bf16.msra.mxu0 %v462
    %481 = vmatprep.subr.bf16.mxu0 0
    %482 = vmatpush1.bf16.msra.mxu0 %v463
    %483 = vmatprep.subr.bf16.mxu0 0
    %484 = vmatpush1.bf16.msra.mxu0 %v464
    %485 = vmatprep.subr.bf16.mxu0 0
    %486 = vmatpush1.bf16.msra.mxu0 %v465
    %487 = vmatprep.subr.bf16.mxu0 0
    %488 = vmatpush1.bf16.msra.mxu0 %v466
    %489 = vmatprep.subr.bf16.mxu0 0
    %490 = vmatpush1.bf16.msra.mxu0 %v467
    %491 = vmatprep.subr.bf16.mxu0 0
    %492 = vmatpush1.bf16.msra.mxu0 %v468
    %493 = vmatprep.subr.bf16.mxu0 0
    %494 = vmatpush1.bf16.msra.mxu0 0
    %495 = vmatprep.subr.bf16.mxu0 0
    %496 = vmatpush1.bf16.msra.mxu0 0
    %497 = vmatprep.subr.bf16.mxu0 0
    %498 = vmatpush1.bf16.msra.mxu0 0
    %499 = vmatprep.subr.bf16.mxu0 0
    %500 = vmatpush1.bf16.msra.mxu0 0
    %501 = vmatprep.subr.bf16.mxu0 0
    %502 = vmatpush1.bf16.msra.mxu0 0
    %503 = vmatprep.subr.bf16.mxu0 0
    %504 = vmatpush1.bf16.msra.mxu0 0
    %505 = vmatprep.subr.bf16.mxu0 0
    %506 = vmatpush1.bf16.msra.mxu0 0
    %507 = vmatprep.subr.bf16.mxu0 0
    %508 = vmatpush1.bf16.msra.mxu0 0
    %509 = vmatprep.mubr.bf16.mxu0 0
    %510 = vmatmul.mubr.bf16.gmra.mrb[0].mxu0 %v405
    %v511 = vpop.f32.mrb[0].mxu0
    %v512 = vadd.f32 0.0, %v511
    %v513 = vpop.f32.mrb[0].mxu0
    %v514 = vpop.f32.mrb[0].mxu0
    %v515 = vadd.f32 0.0, %v514
    %v516 = vpop.f32.mrb[0].mxu0
    %517 = vmatprep.mubr.bf16.mxu0 0
    %518 = vmatmul.mubr.bf16.gmra.mrb[0].mxu0 %v406
    %v519 = vpop.f32.mrb[0].mxu0
    %v520 = vadd.f32 0.0, %v519
    %v521 = vpop.f32.mrb[0].mxu0
    %v522 = vpop.f32.mrb[0].mxu0
    %v523 = vadd.f32 0.0, %v522
    %v524 = vpop.f32.mrb[0].mxu0
    %525 = vmatprep.mubr.bf16.mxu0 0
    %526 = vmatmul.mubr.bf16.gmra.mrb[0].mxu0 %v407
    %v527 = vpop.f32.mrb[0].mxu0
    %v528 = vadd.f32 0.0, %v527
    %v529 = vpop.f32.mrb[0].mxu0
    %v530 = vpop.f32.mrb[0].mxu0
    %v531 = vadd.f32 0.0, %v530
    %v532 = vpop.f32.mrb[0].mxu0
    %533 = vmatprep.mubr.bf16.mxu0 0
    %534 = vmatmul.mubr.bf16.gmra.mrb[0].mxu0 %v408
    %v535 = vpop.f32.mrb[0].mxu0
    %v536 = vadd.f32 0.0, %v535
    %v537 = vpop.f32.mrb[0].mxu0
    %v538 = vpop.f32.mrb[0].mxu0
    %v539 = vadd.f32 0.0, %v538
    %v540 = vpop.f32.mrb[0].mxu0
    %541 = vmatprep.mubr.bf16.mxu0 0
    %542 = vmatmul.mubr.bf16.gmra.mrb[0].mxu0 %v409
    %v543 = vpop.f32.mrb[0].mxu0
    %v544 = vadd.f32 0.0, %v543
    %v545 = vpop.f32.mrb[0].mxu0
    %v546 = vpop.f32.mrb[0].mxu0
    %v547 = vadd.f32 0.0, %v546
    %v548 = vpop.f32.mrb[0].mxu0
    %549 = vmatprep.mubr.bf16.mxu0 0
    %550 = vmatmul.mubr.bf16.gmra.mrb[0].mxu0 %v410
    %v551 = vpop.f32.mrb[0].mxu0
    %v552 = vadd.f32 0.0, %v551
    %v553 = vpop.f32.mrb[0].mxu0
    %v554 = vpop.f32.mrb[0].mxu0
    %v555 = vadd.f32 0.0, %v554
    %v556 = vpop.f32.mrb[0].mxu0
    %557 = vmatprep.mubr.bf16.mxu0 0
    %558 = vmatmul.mubr.bf16.gmra.mrb[0].mxu0 %v411
    %v559 = vpop.f32.mrb[0].mxu0
    %v560 = vadd.f32 0.0, %v559
    %v561 = vpop.f32.mrb[0].mxu0
    %v562 = vpop.f32.mrb[0].mxu0
    %v563 = vadd.f32 0.0, %v562
    %v564 = vpop.f32.mrb[0].mxu0
    %565 = vmatprep.mubr.bf16.mxu0 0
    %566 = vmatmul.mubr.bf16.gmra.mrb[0].mxu0 %v412
    %v567 = vpop.f32.mrb[0].mxu0
    %v568 = vadd.f32 0.0, %v567
    %v569 = vpop.f32.mrb[0].mxu0
    %v570 = vpop.f32.mrb[0].mxu0
    %v571 = vadd.f32 0.0, %v570
    %v572 = vpop.f32.mrb[0].mxu0
    %573 = vdwg.mxu0
    %v574 = vmul.f32 %v512, 0.5
    %v575 = vmul.f32 %v515, 0.5
    %v576 = vmul.f32 %v520, 0.5
    %v577 = vmul.f32 %v523, 0.5
    %v578 = vmul.f32 %v528, 0.5
    %v579 = vmul.f32 %v531, 0.5
    %v580 = vmul.f32 %v536, 0.5
    %v581 = vmul.f32 %v539, 0.5
    %v582 = vmul.f32 %v544, 0.5
    %v583 = vmul.f32 %v547, 0.5
    %v584 = vmul.f32 %v552, 0.5
    %v585 = vmul.f32 %v555, 0.5
    %v586 = vmul.f32 %v560, 0.5
    %v587 = vmul.f32 %v563, 0.5
    %v588 = vmul.f32 %v568, 0.5
    %v589 = vmul.f32 %v571, 0.5
    %v590 = vtanh.pop %v574
    %v591 = vtanh.pop %v575
    %v592 = vtanh.pop %v576
    %v593 = vtanh.pop %v577
    %v594 = vtanh.pop %v578
    %v595 = vtanh.pop %v579
    %v596 = vtanh.pop %v580
    %v597 = vtanh.pop %v581
    %v598 = vtanh.pop %v582
    %v599 = vtanh.pop %v583
    %v600 = vtanh.pop %v584
    %v601 = vtanh.pop %v585
    %v602 = vtanh.pop %v586
    %v603 = vtanh.pop %v587
    %v604 = vtanh.pop %v588
    %v605 = vtanh.pop %v589
    %v606 = vadd.f32 %v590, 1.0
    %v607 = vadd.f32 %v591, 1.0
    %v608 = vadd.f32 %v592, 1.0
    %v609 = vadd.f32 %v593, 1.0
    %v610 = vadd.f32 %v594, 1.0
    %v611 = vadd.f32 %v595, 1.0
    %v612 = vadd.f32 %v596, 1.0
    %v613 = vadd.f32 %v597, 1.0
    %v614 = vadd.f32 %v598, 1.0
    %v615 = vadd.f32 %v599, 1.0
    %v616 = vadd.f32 %v600, 1.0
    %v617 = vadd.f32 %v601, 1.0
    %v618 = vadd.f32 %v602, 1.0
    %v619 = vadd.f32 %v603, 1.0
    %v620 = vadd.f32 %v604, 1.0
    %v621 = vadd.f32 %v605, 1.0
    %v622 = vmul.f32 %v606, 0.5
    %v623 = vmul.f32 %v607, 0.5
    %v624 = vmul.f32 %v608, 0.5
    %v625 = vmul.f32 %v609, 0.5
    %v626 = vmul.f32 %v610, 0.5
    %v627 = vmul.f32 %v611, 0.5
    %v628 = vmul.f32 %v612, 0.5
    %v629 = vmul.f32 %v613, 0.5
    %v630 = vmul.f32 %v614, 0.5
    %v631 = vmul.f32 %v615, 0.5
    %v632 = vmul.f32 %v616, 0.5
    %v633 = vmul.f32 %v617, 0.5
    %v634 = vmul.f32 %v618, 0.5
    %v635 = vmul.f32 %v619, 0.5
    %v636 = vmul.f32 %v620, 0.5
    %v637 = vmul.f32 %v621, 0.5
    %vm638 = vcmask 7168
    %639 = vst.msk [vmem:[%s5] sm:$0xff] %vm638, %v622
    %640 = vst.msk [vmem:[%s5 + $0x8] sm:$0xff] %vm638, %v623
    %641 = vst.msk [vmem:[%s5 + $0x10] sm:$0xff] %vm638, %v624
    %642 = vst.msk [vmem:[%s5 + $0x18] sm:$0xff] %vm638, %v625
    %643 = vst.msk [vmem:[%s5 + $0x20] sm:$0xff] %vm638, %v626
    %644 = vst.msk [vmem:[%s5 + $0x28] sm:$0xff] %vm638, %v627
    %645 = vst.msk [vmem:[%s5 + $0x30] sm:$0xff] %vm638, %v628
    %646 = vst.msk [vmem:[%s5 + $0x38] sm:$0xff] %vm638, %v629
    %647 = vst.msk [vmem:[%s5 + $0x40] sm:$0xff] %vm638, %v630
    %648 = vst.msk [vmem:[%s5 + $0x48] sm:$0xff] %vm638, %v631
    %649 = vst.msk [vmem:[%s5 + $0x50] sm:$0xff] %vm638, %v632
    %650 = vst.msk [vmem:[%s5 + $0x58] sm:$0xff] %vm638, %v633
    %651 = vst.msk [vmem:[%s5 + $0x60] sm:$0xff] %vm638, %v634
    %652 = vst.msk [vmem:[%s5 + $0x68] sm:$0xff] %vm638, %v635
    %653 = vst.msk [vmem:[%s5 + $0x70] sm:$0xff] %vm638, %v636
    %654 = vst.msk [vmem:[%s5 + $0x78] sm:$0xff] %vm638, %v637
    // Predicated region
    $region26: #{shallow_deep_nn.1} parent=1 // pred_check
      _
    $region27: #{shallow_deep_nn.1} parent=1 // pred_check_branch
      %656 = sbr.rel (0) target = $region29
    $region28: #{shallow_deep_nn.1} parent=1 // pred_region
      _
    $region29: #{shallow_deep_nn.1} parent=1 // pred_fallthru
      _
    // Predicated region
    $region30: #{shallow_deep_nn.1} parent=1 // pred_check
      _
    $region31: #{shallow_deep_nn.1} parent=1 // pred_check_branch
      %658 = sbr.rel (0) target = $region33
    $region32: #{shallow_deep_nn.1} parent=1 // pred_region
      _
    $region33: #{shallow_deep_nn.1} parent=1 // pred_fallthru
      _
    %659 = vsyncpa [#allocation3], 1

</llo_original>
